<compile_context>
chip_gen: v5e
topology: v5e:2x2
jax: 0.10.0
libtpu: 0.0.40
codegen_flags: <defaults>
</compile_context>

<pallas_src>
import jax
import jax.numpy as jnp
from jax.experimental import pallas as pl
from jax.experimental.pallas import tpu as pltpu


def _single_conv_kernel(x_ref, w_ref, s1_ref, b1_ref, s2_ref, b2_ref, o_ref):
    """One grid step = one (batch element, spatial tile).

    x_ref  : (1, Cin,  T)   input tile (native f32), channels-first, T spatial cols on lanes
    w_ref  : (Cout, Cin)    1x1 conv weights (MXU dtype, e.g. bf16)
    s1_ref : (Cin, 1)       folded BN1 scale  (gamma / sqrt(var + eps))
    b1_ref : (Cin, 1)       folded BN1 bias   (beta - mean * scale)
    s2_ref : (Cout, 1)      folded BN2 scale
    b2_ref : (Cout, 1)      folded BN2 bias
    o_ref  : (1, Cout, T)   f32 output tile
    """
    x = x_ref[0].astype(jnp.float32)                               # (Cin, T)
    a = jnp.maximum(x * s1_ref[...] + b1_ref[...], 0.0)            # BN1 + ReLU (f32, VPU)
    y = jnp.dot(w_ref[...], a.astype(w_ref.dtype),                 # MXU, lane dim = T
                preferred_element_type=jnp.float32)                # (Cout, T), f32 acc
    y = jnp.maximum(y * s2_ref[...] + b2_ref[...], 0.0)            # BN2 + ReLU (f32, VPU)
    o_ref[0] = y.astype(o_ref.dtype)


def _pick_hw_tile(hw, cin, cout, budget_bytes=8 * 1024 * 1024):
    """Largest multiple-of-128 divisor of hw whose per-step footprint fits the budget."""
    if hw % 128 != 0:
        return hw  # full-extent block (always legal for a full array dim)
    # Double-buffered f32 input tile + double-buffered f32 output tile per spatial column.
    per_col = 2 * cin * 4 + 2 * cout * 4
    max_cols = max(128, budget_bytes // per_col)
    best = 128
    for d in range(128, hw + 1, 128):
        if hw % d == 0 and d <= max_cols:
            best = d
    return best


def single_conv_forward(x_nchw, params, eps=1e-5, mxu_dtype=jnp.bfloat16):
    """SingleConv forward: BN(in_ch) -> ReLU -> 1x1 conv (no bias) -> BN(out_ch) -> ReLU.

    Takes and returns NCHW (PyTorch convention). All five ops run inside one pallas_call.
    `mxu_dtype` controls only the matmul operand precision (accumulation is always f32).
    """
    N, Cin, H, W = x_nchw.shape
    Cout = params["w"].shape[0]
    HW = H * W

    # Fold BatchNorm running stats (eval mode) into per-channel scale / bias (tiny JAX glue).
    s1 = params["g1"] / jnp.sqrt(params["v1"] + eps)
    b1 = params["b1"] - params["m1"] * s1
    s2 = params["g2"] / jnp.sqrt(params["v2"] + eps)
    b2 = params["b2"] - params["m2"] * s2

    # Channels-first with flattened spatial: reshape is metadata-only (no transpose, no
    # extra HBM pass) and puts H*W on the lane axis. Activation stays in its native dtype.
    x_flat = x_nchw.reshape(N, Cin, HW)
    w2d = params["w"].reshape(Cout, Cin).astype(mxu_dtype)
    s1 = s1.reshape(Cin, 1).astype(jnp.float32)
    b1 = b1.reshape(Cin, 1).astype(jnp.float32)
    s2 = s2.reshape(Cout, 1).astype(jnp.float32)
    b2 = b2.reshape(Cout, 1).astype(jnp.float32)

    t = _pick_hw_tile(HW, Cin, Cout)
    grid = (N, HW // t)

    out = pl.pallas_call(
        _single_conv_kernel,
        out_shape=jax.ShapeDtypeStruct((N, Cout, HW), jnp.float32),
        grid=grid,
        in_specs=[
            pl.BlockSpec((1, Cin, t), lambda n, i: (n, 0, i)),
            pl.BlockSpec((Cout, Cin), lambda n, i: (0, 0)),
            pl.BlockSpec((Cin, 1), lambda n, i: (0, 0)),
            pl.BlockSpec((Cin, 1), lambda n, i: (0, 0)),
            pl.BlockSpec((Cout, 1), lambda n, i: (0, 0)),
            pl.BlockSpec((Cout, 1), lambda n, i: (0, 0)),
        ],
        out_specs=pl.BlockSpec((1, Cout, t), lambda n, i: (n, 0, i)),
        compiler_params=pltpu.CompilerParams(
            dimension_semantics=("parallel", "parallel")),
    )(x_flat, w2d, s1, b1, s2, b2)

    return out.reshape(N, Cout, H, W)


def make_params(key, in_ch, out_ch):
    ks = jax.random.split(key, 9)
    return {
        # PyTorch Conv2d(in_ch, out_ch, kernel_size=1, bias=False): (out_ch, in_ch, 1, 1)
        "w":  0.1 * jax.random.normal(ks[0], (out_ch, in_ch, 1, 1), jnp.float32),
        # BatchNorm2d(in_ch): gamma, beta, running_mean, running_var
        "g1": 1.0 + 0.1 * jax.random.normal(ks[1], (in_ch,), jnp.float32),
        "b1": 0.1 * jax.random.normal(ks[2], (in_ch,), jnp.float32),
        "m1": 0.05 * jax.random.normal(ks[3], (in_ch,), jnp.float32),
        "v1": 1.0 + 0.1 * jax.random.uniform(ks[4], (in_ch,), jnp.float32),
        # BatchNorm2d(out_ch)
        "g2": 1.0 + 0.1 * jax.random.normal(ks[5], (out_ch,), jnp.float32),
        "b2": 0.1 * jax.random.normal(ks[6], (out_ch,), jnp.float32),
        "m2": 0.05 * jax.random.normal(ks[7], (out_ch,), jnp.float32),
        "v2": 1.0 + 0.1 * jax.random.uniform(ks[8], (out_ch,), jnp.float32),
    }


def _reference_forward(x_nchw, params, eps=1e-5):
    """Pure-JAX reference (XLA conv) for validation."""
    s1 = params["g1"] / jnp.sqrt(params["v1"] + eps)
    b1 = params["b1"] - params["m1"] * s1
    a = jnp.maximum(x_nchw * s1.reshape(1, -1, 1, 1) + b1.reshape(1, -1, 1, 1), 0.0)
    y = jax.lax.conv_general_dilated(
        a, params["w"], window_strides=(1, 1), padding="VALID",
        dimension_numbers=("NCHW", "OIHW", "NCHW"))
    s2 = params["g2"] / jnp.sqrt(params["v2"] + eps)
    b2 = params["b2"] - params["m2"] * s2
    return jnp.maximum(y * s2.reshape(1, -1, 1, 1) + b2.reshape(1, -1, 1, 1), 0.0)


if __name__ == "__main__":
    key = jax.random.PRNGKey(0)
    k_x, k_p = jax.random.split(key)

    N, in_ch, out_ch, H, W = 2, 4, 8, 16, 16
    x = jax.random.normal(k_x, (N, in_ch, H, W), jnp.float32)  # NCHW like PyTorch
    params = make_params(k_p, in_ch, out_ch)

    ref = _reference_forward(x, params)

    # f32 MXU path: tight numerical check.
    out_f32 = jax.block_until_ready(
        single_conv_forward(x, params, mxu_dtype=jnp.float32))
    assert out_f32.shape == (N, out_ch, H, W)
    assert jnp.allclose(out_f32, ref, atol=1e-4, rtol=1e-4), "f32 mismatch vs reference"

    # bf16 MXU path (default; f32 activations in HBM, bf16 only on the MXU operands,
    # f32 accumulation + f32 BN/ReLU epilogue).
    out_bf16 = jax.block_until_ready(single_conv_forward(x, params))
    assert out_bf16.shape == (N, out_ch, H, W)
    assert jnp.allclose(out_bf16, ref, atol=2e-2, rtol=2e-2), "bf16 mismatch vs reference"

    print("KERNEL_OK")
</pallas_src>

<mosaic_0001>
module attributes {stable_mosaic.version = 11 : i64} {
  func.func @_single_conv_kernel(%arg0: i32, %arg1: i32, %arg2: memref<1x4x256xf32, #tpu.memory_space<vmem>>, %arg3: memref<8x4xf32, #tpu.memory_space<vmem>>, %arg4: memref<4x1xf32, #tpu.memory_space<vmem>>, %arg5: memref<4x1xf32, #tpu.memory_space<vmem>>, %arg6: memref<8x1xf32, #tpu.memory_space<vmem>>, %arg7: memref<8x1xf32, #tpu.memory_space<vmem>>, %arg8: memref<1x8x256xf32, #tpu.memory_space<vmem>>) attributes {dimension_semantics = [#tpu.dimension_semantics<parallel>, #tpu.dimension_semantics<parallel>], iteration_bounds = array<i64: 2, 1>, scalar_prefetch = 0 : i64, scratch_operands = 0 : i64, tpu.core_type = #tpu.core_type<tc>, window_params = [{transform_indices = @transform_0, window_bounds = array<i64: 1, 4, 256>}, {pipeline_mode = #tpu.pipeline_mode<synchronous>, transform_indices = @transform_1, window_bounds = array<i64: 8, 4>}, {pipeline_mode = #tpu.pipeline_mode<synchronous>, transform_indices = @transform_2, window_bounds = array<i64: 4, 1>}, {pipeline_mode = #tpu.pipeline_mode<synchronous>, transform_indices = @transform_3, window_bounds = array<i64: 4, 1>}, {pipeline_mode = #tpu.pipeline_mode<synchronous>, transform_indices = @transform_4, window_bounds = array<i64: 8, 1>}, {pipeline_mode = #tpu.pipeline_mode<synchronous>, transform_indices = @transform_5, window_bounds = array<i64: 8, 1>}, {transform_indices = @transform_6, window_bounds = array<i64: 1, 8, 256>}]} {
    %c0 = arith.constant 0 : index
    %c0_0 = arith.constant 0 : index
    %c0_1 = arith.constant 0 : index
    %0 = vector.load %arg2[%c0, %c0_0, %c0_1] : memref<1x4x256xf32, #tpu.memory_space<vmem>>, vector<1x4x256xf32>
    %1 = vector.shape_cast %0 : vector<1x4x256xf32> to vector<4x256xf32>
    %c0_2 = arith.constant 0 : index
    %c0_3 = arith.constant 0 : index
    %2 = vector.load %arg4[%c0_2, %c0_3] : memref<4x1xf32, #tpu.memory_space<vmem>>, vector<4x1xf32>
    %3 = vector.broadcast %2 : vector<4x1xf32> to vector<4x256xf32>
    %4 = arith.mulf %1, %3 : vector<4x256xf32>
    %c0_4 = arith.constant 0 : index
    %c0_5 = arith.constant 0 : index
    %5 = vector.load %arg5[%c0_4, %c0_5] : memref<4x1xf32, #tpu.memory_space<vmem>>, vector<4x1xf32>
    %6 = vector.broadcast %5 : vector<4x1xf32> to vector<4x256xf32>
    %7 = arith.addf %4, %6 : vector<4x256xf32>
    %cst = arith.constant 0.000000e+00 : f32
    %8 = vector.broadcast %cst : f32 to vector<4x256xf32>
    %9 = arith.maximumf %7, %8 : vector<4x256xf32>
    %c0_6 = arith.constant 0 : index
    %c0_7 = arith.constant 0 : index
    %10 = vector.load %arg3[%c0_6, %c0_7] : memref<8x4xf32, #tpu.memory_space<vmem>>, vector<8x4xf32>
    %cst_8 = arith.constant dense<0.000000e+00> : vector<8x256xf32>
    %11 = tpu.matmul %10, %9, %cst_8 {dimension_numbers = #tpu.dot_dimension_numbers<[1], [0], [0], [1], [0, 0, 1, 1], [], []>} : vector<8x4xf32>, vector<4x256xf32>, vector<8x256xf32> -> vector<8x256xf32>
    %c0_9 = arith.constant 0 : index
    %c0_10 = arith.constant 0 : index
    %12 = vector.load %arg6[%c0_9, %c0_10] : memref<8x1xf32, #tpu.memory_space<vmem>>, vector<8x1xf32>
    %13 = vector.broadcast %12 : vector<8x1xf32> to vector<8x256xf32>
    %14 = arith.mulf %11, %13 : vector<8x256xf32>
    %c0_11 = arith.constant 0 : index
    %c0_12 = arith.constant 0 : index
    %15 = vector.load %arg7[%c0_11, %c0_12] : memref<8x1xf32, #tpu.memory_space<vmem>>, vector<8x1xf32>
    %16 = vector.broadcast %15 : vector<8x1xf32> to vector<8x256xf32>
    %17 = arith.addf %14, %16 : vector<8x256xf32>
    %cst_13 = arith.constant 0.000000e+00 : f32
    %18 = vector.broadcast %cst_13 : f32 to vector<8x256xf32>
    %19 = arith.maximumf %17, %18 : vector<8x256xf32>
    %c0_14 = arith.constant 0 : index
    %c0_15 = arith.constant 0 : index
    %c0_16 = arith.constant 0 : index
    %20 = vector.load %arg8[%c0_14, %c0_15, %c0_16] : memref<1x8x256xf32, #tpu.memory_space<vmem>>, vector<1x8x256xf32>
    %21 = vector.shape_cast %20 : vector<1x8x256xf32> to vector<8x256xf32>
    %22 = vector.shape_cast %19 : vector<8x256xf32> to vector<1x8x256xf32>
    tpu.vector_store %arg8[%c0_14, %c0_15, %c0_16], %22 {strides = array<i32>} : memref<1x8x256xf32, #tpu.memory_space<vmem>>, vector<1x8x256xf32>,
    return
  }
  func.func @transform_0(%arg0: i32, %arg1: i32) -> (i32, i32, i32) {
    %c0_i32 = arith.constant 0 : i32
    %c0_i32_0 = arith.constant 0 : i32
    return %arg0, %c0_i32, %arg1 : i32, i32, i32
  }
  func.func @transform_1(%arg0: i32, %arg1: i32) -> (i32, i32) {
    %c0_i32 = arith.constant 0 : i32
    %c0_i32_0 = arith.constant 0 : i32
    %c0_i32_1 = arith.constant 0 : i32
    return %c0_i32, %c0_i32_0 : i32, i32
  }
  func.func @transform_2(%arg0: i32, %arg1: i32) -> (i32, i32) {
    %c0_i32 = arith.constant 0 : i32
    %c0_i32_0 = arith.constant 0 : i32
    %c0_i32_1 = arith.constant 0 : i32
    return %c0_i32, %c0_i32_0 : i32, i32
  }
  func.func @transform_3(%arg0: i32, %arg1: i32) -> (i32, i32) {
    %c0_i32 = arith.constant 0 : i32
    %c0_i32_0 = arith.constant 0 : i32
    %c0_i32_1 = arith.constant 0 : i32
    return %c0_i32, %c0_i32_0 : i32, i32
  }
  func.func @transform_4(%arg0: i32, %arg1: i32) -> (i32, i32) {
    %c0_i32 = arith.constant 0 : i32
    %c0_i32_0 = arith.constant 0 : i32
    %c0_i32_1 = arith.constant 0 : i32
    return %c0_i32, %c0_i32_0 : i32, i32
  }
  func.func @transform_5(%arg0: i32, %arg1: i32) -> (i32, i32) {
    %c0_i32 = arith.constant 0 : i32
    %c0_i32_0 = arith.constant 0 : i32
    %c0_i32_1 = arith.constant 0 : i32
    return %c0_i32, %c0_i32_0 : i32, i32
  }
  func.func @transform_6(%arg0: i32, %arg1: i32) -> (i32, i32, i32) {
    %c0_i32 = arith.constant 0 : i32
    %c0_i32_0 = arith.constant 0 : i32
    return %arg0, %c0_i32, %arg1 : i32, i32, i32
  }
}

</mosaic_0001>

<llo_original>
// kernel: tpu_custom_call.1
$region0: #{tpu_custom_call.1}
  #allocation0 [shape = 'u32[]', space=smem, size = 0x4, offset = 0x4, fixed_abs, tag = 'smem constant byte address 0x4 - core index']
  #allocation1 [shape = 'u32[72,128]{1,0:T(1,128)}', space=vmem, size = 0x9000, scoped, tag = 'internal scratch']
  %s0 = inlined_call_operand.vmem [shape: f32[2,4,256], index: 0, kind: input, shape index: {}]
  %s1 = inlined_call_operand.vmem [shape: f32[8,4], index: 1, kind: input, shape index: {}]
  %s2 = inlined_call_operand.vmem [shape: f32[4,1], index: 2, kind: input, shape index: {}]
  %s3 = inlined_call_operand.vmem [shape: f32[4,1], index: 3, kind: input, shape index: {}]
  %s4 = inlined_call_operand.vmem [shape: f32[8,1], index: 4, kind: input, shape index: {}]
  %s5 = inlined_call_operand.vmem [shape: f32[8,1], index: 5, kind: input, shape index: {}]
  %s6 = inlined_call_operand.hbm [shape: f32[2,8,256], index: 6, kind: output, shape index: {}]
  %s7 = sld [smem:[#allocation0]]
  $region57: #{tpu_custom_call.1} parent=0
    _
  %s9 = ssub.s32 1, %s7
  %s10 = scalar_select 0, %s9, %s7
  $region1: #{tpu_custom_call.1} parent=0
    #allocation2 [shape = 'u8[16384]{0}', space=vmem, size = 0x4000, scoped, tag = 'output window, operand 0']
    #allocation3 [shape = 's32[2]{0}', space=sflag, size = 0x8, scoped, tag = 'scoped memory for tpu_custom_call.1']
    %11 = vsyncpa [#allocation3], 0
    %s12 = scalar_lea.sflag [#allocation3], 1
    %13 = vsyncpa %s12, 0
    loop: start=0, step=1, limit=4
    $region2: #{tpu_custom_call.1} parent=1 // loop_pre_header
      _
    $region3: #{tpu_custom_call.1} parent=1 // loop_header
      %s15 = sphi 0, %s19
      %p16 = scmp.ge.s32.totalorder %s15, 4
      %s22 = sphi 0, %s34
      %s23 = sphi 0, %s30
      %s24 = sphi 0, %s22
      %s25 = sphi 0, %s23
      %s26 = sphi 0, %s24
      %s27 = sphi 0, %s25
      %s39 = sphi 0, %s41
      %s42 = sphi 0, %s39
      %s43 = sphi 0, %s42
      %s59 = sphi 0, %s43
      %s63 = sphi 0, %s63
      %s65 = sphi 0, %s63
      %s66 = sphi 0, %s65
      %s80 = sphi 0, %s66
      %s84 = sphi 0, %s84
      %s86 = sphi 0, %s84
      %s87 = sphi 0, %s86
      %s101 = sphi 0, %s87
      %s105 = sphi 0, %s105
      %s107 = sphi 0, %s105
      %s108 = sphi 0, %s107
      %s122 = sphi 0, %s108
      %s126 = sphi 0, %s126
      %s128 = sphi 0, %s126
      %s129 = sphi 0, %s128
      %s143 = sphi 0, %s129
      %s147 = sphi 0, %s147
      %s149 = sphi 0, %s147
      %s150 = sphi 0, %s149
      %s164 = sphi 0, %s150
      %s172 = sphi 0, %s174
      %s175 = sphi 0, %s172
      %s176 = sphi 0, %s175
      %s192 = sphi 0, %s176
    $region4: #{tpu_custom_call.1} parent=1 // loop_header_branch
      %18 = sbr.rel (%p16) target = $region8
    $region5: #{tpu_custom_call.1} parent=1 // loop_body
      %s20 = ssub.s32 %s15, 1
      %s21 = ssub.s32 %s15, 2
      %s28 = sadd.s32 1, %s23
      %p29 = scmp.ge.s32.totalorder %s28, 1
      %s30 = scalar_select %p29, 0, %s28
      %s31 = sadd.s32 1, %s22
      %s32 = scalar_select %p29, %s31, %s22
      %p33 = scmp.ge.s32.totalorder %s32, 2
      %s34 = scalar_select %p33, 0, %s32
      %s35 = ssub.s32 %s22, %s34
      %s36 = ssub.s32 %s23, %s30
      %s37 = sor.u32 %s35, %s36
      %p38 = scmp.eq.s32.totalorder %s37, 0
      %s40 = sadd.s32 %s39, 1
      %s41 = scalar_select %p38, %s39, %s40
      %p44 = pneg %p38
      %p45 = scmp.eq.s32.totalorder %s15, 1
      %p46 = por %p44, %p45
      %p47 = scmp.ne.s32.totalorder %s39, %s42
      %p48 = scmp.eq.s32.totalorder %s15, 0
      %p49 = por %p47, %p48
      %p50 = scmp.ne.s32.totalorder %s39, %s42
      %p51 = scmp.eq.s32.totalorder %s20, 1
      %p52 = por %p50, %p51
      %p53 = scmp.ne.s32.totalorder %s42, %s43
      %p54 = scmp.eq.s32.totalorder %s20, 0
      %p55 = por %p53, %p54
      %p56 = scmp.ne.s32.totalorder %s42, %s43
      %p57 = scmp.eq.s32.totalorder %s21, 1
      %p58 = por %p56, %p57
      %p60 = scmp.ne.s32.totalorder %s43, %s59
      %p61 = scmp.eq.s32.totalorder %s21, 0
      %p62 = por %p60, %p61
      %s64 = sadd.s32 %s63, 1
      %p67 = scmp.eq.s32.totalorder %s15, 1
      %p68 = scmp.ne.s32.totalorder %s63, %s65
      %p69 = scmp.eq.s32.totalorder %s15, 0
      %p70 = por %p68, %p69
      %p71 = scmp.ne.s32.totalorder %s63, %s65
      %p72 = scmp.eq.s32.totalorder %s20, 1
      %p73 = por %p71, %p72
      %p74 = scmp.ne.s32.totalorder %s65, %s66
      %p75 = scmp.eq.s32.totalorder %s20, 0
      %p76 = por %p74, %p75
      %p77 = scmp.ne.s32.totalorder %s65, %s66
      %p78 = scmp.eq.s32.totalorder %s21, 1
      %p79 = por %p77, %p78
      %p81 = scmp.ne.s32.totalorder %s66, %s80
      %p82 = scmp.eq.s32.totalorder %s21, 0
      %p83 = por %p81, %p82
      %s85 = sadd.s32 %s84, 1
      %p88 = scmp.eq.s32.totalorder %s15, 1
      %p89 = scmp.ne.s32.totalorder %s84, %s86
      %p90 = scmp.eq.s32.totalorder %s15, 0
      %p91 = por %p89, %p90
      %p92 = scmp.ne.s32.totalorder %s84, %s86
      %p93 = scmp.eq.s32.totalorder %s20, 1
      %p94 = por %p92, %p93
      %p95 = scmp.ne.s32.totalorder %s86, %s87
      %p96 = scmp.eq.s32.totalorder %s20, 0
      %p97 = por %p95, %p96
      %p98 = scmp.ne.s32.totalorder %s86, %s87
      %p99 = scmp.eq.s32.totalorder %s21, 1
      %p100 = por %p98, %p99
      %p102 = scmp.ne.s32.totalorder %s87, %s101
      %p103 = scmp.eq.s32.totalorder %s21, 0
      %p104 = por %p102, %p103
      %s106 = sadd.s32 %s105, 1
      %p109 = scmp.eq.s32.totalorder %s15, 1
      %p110 = scmp.ne.s32.totalorder %s105, %s107
      %p111 = scmp.eq.s32.totalorder %s15, 0
      %p112 = por %p110, %p111
      %p113 = scmp.ne.s32.totalorder %s105, %s107
      %p114 = scmp.eq.s32.totalorder %s20, 1
      %p115 = por %p113, %p114
      %p116 = scmp.ne.s32.totalorder %s107, %s108
      %p117 = scmp.eq.s32.totalorder %s20, 0
      %p118 = por %p116, %p117
      %p119 = scmp.ne.s32.totalorder %s107, %s108
      %p120 = scmp.eq.s32.totalorder %s21, 1
      %p121 = por %p119, %p120
      %p123 = scmp.ne.s32.totalorder %s108, %s122
      %p124 = scmp.eq.s32.totalorder %s21, 0
      %p125 = por %p123, %p124
      %s127 = sadd.s32 %s126, 1
      %p130 = scmp.eq.s32.totalorder %s15, 1
      %p131 = scmp.ne.s32.totalorder %s126, %s128
      %p132 = scmp.eq.s32.totalorder %s15, 0
      %p133 = por %p131, %p132
      %p134 = scmp.ne.s32.totalorder %s126, %s128
      %p135 = scmp.eq.s32.totalorder %s20, 1
      %p136 = por %p134, %p135
      %p137 = scmp.ne.s32.totalorder %s128, %s129
      %p138 = scmp.eq.s32.totalorder %s20, 0
      %p139 = por %p137, %p138
      %p140 = scmp.ne.s32.totalorder %s128, %s129
      %p141 = scmp.eq.s32.totalorder %s21, 1
      %p142 = por %p140, %p141
      %p144 = scmp.ne.s32.totalorder %s129, %s143
      %p145 = scmp.eq.s32.totalorder %s21, 0
      %p146 = por %p144, %p145
      %s148 = sadd.s32 %s147, 1
      %p151 = scmp.eq.s32.totalorder %s15, 1
      %p152 = scmp.ne.s32.totalorder %s147, %s149
      %p153 = scmp.eq.s32.totalorder %s15, 0
      %p154 = por %p152, %p153
      %p155 = scmp.ne.s32.totalorder %s147, %s149
      %p156 = scmp.eq.s32.totalorder %s20, 1
      %p157 = por %p155, %p156
      %p158 = scmp.ne.s32.totalorder %s149, %s150
      %p159 = scmp.eq.s32.totalorder %s20, 0
      %p160 = por %p158, %p159
      %p161 = scmp.ne.s32.totalorder %s149, %s150
      %p162 = scmp.eq.s32.totalorder %s21, 1
      %p163 = por %p161, %p162
      %p165 = scmp.ne.s32.totalorder %s150, %s164
      %p166 = scmp.eq.s32.totalorder %s21, 0
      %p167 = por %p165, %p166
      %s168 = ssub.s32 %s22, %s34
      %s169 = ssub.s32 %s23, %s30
      %s170 = sor.u32 %s168, %s169
      %p171 = scmp.eq.s32.totalorder %s170, 0
      %s173 = sadd.s32 %s172, 1
      %s174 = scalar_select %p171, %s172, %s173
      %p177 = pneg %p171
      %p178 = scmp.eq.s32.totalorder %s15, 1
      %p179 = por %p177, %p178
      %p180 = scmp.ne.s32.totalorder %s172, %s175
      %p181 = scmp.eq.s32.totalorder %s15, 0
      %p182 = por %p180, %p181
      %p183 = scmp.ne.s32.totalorder %s172, %s175
      %p184 = scmp.eq.s32.totalorder %s20, 1
      %p185 = por %p183, %p184
      %p186 = scmp.ne.s32.totalorder %s175, %s176
      %p187 = scmp.eq.s32.totalorder %s20, 0
      %p188 = por %p186, %p187
      %p189 = scmp.ne.s32.totalorder %s175, %s176
      %p190 = scmp.eq.s32.totalorder %s21, 1
      %p191 = por %p189, %p190
      %p193 = scmp.ne.s32.totalorder %s176, %s192
      %p194 = scmp.eq.s32.totalorder %s21, 0
      %p195 = por %p193, %p194
      %p196 = scmp.le.s32.totalorder 1, %s15
      %p197 = scmp.lt.s32.totalorder %s15, 3
      %p198 = pnand %p196, %p197
      %p199 = pneg %p198
      // Predicated region
      $region9: #{tpu_custom_call.1} parent=5 // pred_check
        _
      $region10: #{tpu_custom_call.1} parent=5 // pred_check_branch
        %201 = sbr.rel (%p198) target = $region12
      $region11: #{tpu_custom_call.1} parent=5 // pred_region
        %s202 = ssub.s32 %s15, 1
        // Predicated region
        $region13: #{tpu_custom_call.1} parent=11 // pred_check
          %p203 = pneg %p76
        $region14: #{tpu_custom_call.1} parent=11 // pred_check_branch
          %205 = sbr.rel (%p203) target = $region16
        $region15: #{tpu_custom_call.1} parent=11 // pred_region
          _
        $region16: #{tpu_custom_call.1} parent=11 // pred_fallthru
          _
        // Predicated region
        $region17: #{tpu_custom_call.1} parent=11 // pred_check
          %p206 = pneg %p97
        $region18: #{tpu_custom_call.1} parent=11 // pred_check_branch
          %208 = sbr.rel (%p206) target = $region20
        $region19: #{tpu_custom_call.1} parent=11 // pred_region
          _
        $region20: #{tpu_custom_call.1} parent=11 // pred_fallthru
          _
        // Predicated region
        $region21: #{tpu_custom_call.1} parent=11 // pred_check
          %p209 = pneg %p118
        $region22: #{tpu_custom_call.1} parent=11 // pred_check_branch
          %211 = sbr.rel (%p209) target = $region24
        $region23: #{tpu_custom_call.1} parent=11 // pred_region
          _
        $region24: #{tpu_custom_call.1} parent=11 // pred_fallthru
          _
        // Predicated region
        $region25: #{tpu_custom_call.1} parent=11 // pred_check
          %p212 = pneg %p139
        $region26: #{tpu_custom_call.1} parent=11 // pred_check_branch
          %214 = sbr.rel (%p212) target = $region28
        $region27: #{tpu_custom_call.1} parent=11 // pred_region
          _
        $region28: #{tpu_custom_call.1} parent=11 // pred_fallthru
          _
        // Predicated region
        $region29: #{tpu_custom_call.1} parent=11 // pred_check
          %p215 = pneg %p160
        $region30: #{tpu_custom_call.1} parent=11 // pred_check_branch
          %217 = sbr.rel (%p215) target = $region32
        $region31: #{tpu_custom_call.1} parent=11 // pred_region
          _
        $region32: #{tpu_custom_call.1} parent=11 // pred_fallthru
          _
      $region12: #{tpu_custom_call.1} parent=5 // pred_fallthru
        _
      %p218 = scmp.lt.s32.totalorder %s15, 2
      // Predicated region
      $region33: #{tpu_custom_call.1} parent=5 // pred_check
        %p219 = pneg %p218
      $region34: #{tpu_custom_call.1} parent=5 // pred_check_branch
        %221 = sbr.rel (%p219) target = $region36
      $region35: #{tpu_custom_call.1} parent=5 // pred_region
        // Predicated region
        $region37: #{tpu_custom_call.1} parent=35 // pred_check
          %p222 = pneg %p49
        $region38: #{tpu_custom_call.1} parent=35 // pred_check_branch
          %224 = sbr.rel (%p222) target = $region40
        $region39: #{tpu_custom_call.1} parent=35 // pred_region
          %s225 = smul.u32 2, %s23
          %p226 = scmp.lt.s32.totalorder %s22, 1
          %s227 = scalar_select %p226, %s22, 1
          %p228 = scmp.lt.s32.totalorder %s225, 1
          %s229 = scalar_select %p228, %s225, 1
          %s230 = smul.addr %s227, 2
          %s231 = sadd.s32 %s229, %s230
          %s232 = smul.addr %s231, 4
          %s233 = scalar_lea.vmem %s0, %s232
          %s234 = smul.u32 2, %s23
        $region40: #{tpu_custom_call.1} parent=35 // pred_fallthru
          _
      $region36: #{tpu_custom_call.1} parent=5 // pred_fallthru
        _
      %p235 = scmp.le.s32.totalorder 1, %s15
      %p236 = scmp.lt.s32.totalorder %s15, 3
      %p237 = pnand %p235, %p236
      %p238 = pneg %p237
      // Predicated region
      $region41: #{tpu_custom_call.1} parent=5 // pred_check
        _
      $region42: #{tpu_custom_call.1} parent=5 // pred_check_branch
        %240 = sbr.rel (%p237) target = $region44
      $region43: #{tpu_custom_call.1} parent=5 // pred_region
        %s241 = ssub.s32 %s15, 1
        %s242 = smul.u32 2, %s25
        %p243 = scmp.lt.s32.totalorder %s24, 1
        %s244 = scalar_select %p243, %s24, 1
        %p245 = scmp.lt.s32.totalorder %s242, 1
        %s246 = scalar_select %p245, %s242, 1
        %s247 = smul.addr %s244, 2
        %s248 = sadd.s32 %s246, %s247
        %s249 = smul.addr %s248, 4
        %s250 = scalar_lea.vmem %s0, %s249
        %p251 = pneg %p55
        %p252 = pneg %p52
        %p253 = pneg %p76
        %p254 = pneg %p73
        %p255 = pneg %p97
        %p256 = pneg %p94
        %p257 = pneg %p118
        %p258 = pneg %p115
        %p259 = pneg %p139
        %p260 = pneg %p136
        %p261 = pneg %p160
        %p262 = pneg %p157
        %p263 = pneg %p188
        %p264 = pneg %p185
        %s265 = sand.u32 %s175, 1
        %s266 = scalar_lea.sflag [#allocation3], %s265
        %s267 = sand.u32 %s175, 1
        %s268 = smul.addr %s267, 16
        %s269 = scalar_lea.vmem [#allocation2], %s268
        %s270 = smul.u32 2, %s25
        %p271 = scmp.lt.s32.totalorder %s24, 1
        %s272 = scalar_select %p271, %s24, 1
        %p273 = scmp.lt.s32.totalorder %s270, 1
        %s274 = scalar_select %p273, %s270, 1
        %s275 = smul.addr %s272, 2
        %s276 = sadd.s32 %s274, %s275
        %s277 = smul.addr %s276, 4
        %s278 = scalar_lea.vmem %s0, %s277
        %s279 = smul.u32 2, %s25
        %s280 = smul.u32 2, %s25
        %v281 = vld [vmem:[%s278] sm:$0xff]
        %v282 = vld [vmem:[%s2] sm:$0xf]
        %284 = vset.pattern.permute.xlu0 0
        %285 = vperm.xlu0 %284, %v282
        %v286 = vpop.permute.xlu0 %285
        %v288 = vunpack.c.l.s4 839922192
        %v289 = vunpack.c.0.s8 %v288
        %v290 = vperm.slane %v286, %v289
        %v292 = vmul.f32 %v281, %v290
        %v293 = vld [vmem:[%s3] sm:$0xf]
        %295 = vset.pattern.permute.xlu0 0
        %296 = vperm.xlu0 %295, %v293
        %v297 = vpop.permute.xlu0 %296
        %v299 = vunpack.c.l.s4 839922192
        %v300 = vunpack.c.0.s8 %v299
        %v301 = vperm.slane %v297, %v300
        %v303 = vadd.f32 %v292, %v301
        %v304 = vmax.f32 %v303, 0.0
        %v305 = vld [vmem:[%s1] sm:$0xff]
        %307 = vst [vmem:[#allocation1] ss:$2 sm:$0xff] %v304
        %v308 = vld.sshfl [vmem:[#allocation1] sm:$0xff pattern:$0x75316420]
        %v309 = vld.sshfl [vmem:[#allocation1 + $0x8] sm:$0xff pattern:$0x75316420]
        %vm310 = vcmask 31744
        %v312 = vsel %vm310, %v305, 0
        %vm314 = vcmask 1043456
        %v315 = vsel %vm314, %v308, 0
        %v317 = vsel %vm314, %v309, 0
        %319 = vmatpush.msra.mxu0 0.0
        %320 = vmatpush.msra.mxu0 0.0
        %321 = vmatpush.msra.mxu0 0.0
        %322 = vmatpush.msra.mxu0 0.0
        %323 = vmatpush.msra.mxu0 0.0
        %324 = vmatpush.msra.mxu0 0.0
        %325 = vmatpush.msra.mxu0 0.0
        %326 = vmatpush.msra.mxu0 0.0
        %327 = vmatpush.msra.mxu0 0.0
        %328 = vmatpush.msra.mxu0 0.0
        %329 = vmatpush.msra.mxu0 0.0
        %330 = vmatpush.msra.mxu0 0.0
        %331 = vmatpush.msra.mxu0 0.0
        %332 = vmatpush.msra.mxu0 0.0
        %333 = vmatpush.msra.mxu0 0.0
        %334 = vmatpush.msra.mxu0 %v315
        %335 = vmatmul.f32.gmra.mxu0 %v312
        %v336 = vpop.f32.mrf.mxu0
        %v337 = vadd.f32 0.0, %v336
        %338 = vdwg.mxu0
        %339 = vmatpush.msra.mxu0 0.0
        %340 = vmatpush.msra.mxu0 0.0
        %341 = vmatpush.msra.mxu0 0.0
        %342 = vmatpush.msra.mxu0 0.0
        %343 = vmatpush.msra.mxu0 0.0
        %344 = vmatpush.msra.mxu0 0.0
        %345 = vmatpush.msra.mxu0 0.0
        %346 = vmatpush.msra.mxu0 0.0
        %347 = vmatpush.msra.mxu0 0.0
        %348 = vmatpush.msra.mxu0 0.0
        %349 = vmatpush.msra.mxu0 0.0
        %350 = vmatpush.msra.mxu0 0.0
        %351 = vmatpush.msra.mxu0 0.0
        %352 = vmatpush.msra.mxu0 0.0
        %353 = vmatpush.msra.mxu0 0.0
        %354 = vmatpush.msra.mxu0 %v317
        %355 = vmatmul.f32.gmra.mxu0 %v312
        %v356 = vpop.f32.mrf.mxu0
        %v357 = vadd.f32 0.0, %v356
        %358 = vdwg.mxu0
        %v359 = vld [vmem:[%s4] sm:$0xff]
        %361 = vset.pattern.permute.xlu0 0
        %362 = vperm.xlu0 %361, %v359
        %v363 = vpop.permute.xlu0 %362
        %v365 = vmul.f32 %v337, %v363
        %v366 = vmul.f32 %v357, %v363
        %v367 = vld [vmem:[%s5] sm:$0xff]
        %369 = vset.pattern.permute.xlu0 0
        %370 = vperm.xlu0 %369, %v367
        %v371 = vpop.permute.xlu0 %370
        %v373 = vadd.f32 %v365, %v371
        %v374 = vadd.f32 %v366, %v371
        %v375 = vmax.f32 %v373, 0.0
        %v376 = vmax.f32 %v374, 0.0
        %377 = vst [vmem:[%s269] sm:$0xff] %v375
        %378 = vst [vmem:[%s269 + $0x8] sm:$0xff] %v376
        %s379 = sand.u32 %s175, 1
        %s380 = scalar_lea.sflag [#allocation3], %s379
        %s381 = sand.u32 %s175, 1
        %s382 = smul.addr %s381, 16
        %s383 = scalar_lea.vmem [#allocation2], %s382
        // Predicated region
        $region45: #{tpu_custom_call.1} parent=43 // pred_check
          %p384 = pneg %p185
        $region46: #{tpu_custom_call.1} parent=43 // pred_check_branch
          %386 = sbr.rel (%p384) target = $region48
        $region47: #{tpu_custom_call.1} parent=43 // pred_region
          %s387 = smul.u32 2, %s25
          %389 = vsyncadd %s380, 0
          %s390 = smul.addr %s24, 2
          %s391 = sadd.s32 %s387, %s390
          %s392 = smul.addr %s391, 8
          %s393 = scalar_lea.hbm %s6, %s392
          %s395 = sshll.u32 %s383, 4
          %s396 = int_to_ptr.vmem [resolvable:$true] %s395
          %s397 = sshll.u32 %s393, 4
          %s398 = int_to_ptr.hbm [resolvable:$true] %s397
          %400 = dma.vmem_to_hbm [thread:$0]  %s396, 256, %s398, %s380
        $region48: #{tpu_custom_call.1} parent=43 // pred_fallthru
          _
      $region44: #{tpu_custom_call.1} parent=5 // pred_fallthru
        _
      %p401 = scmp.le.s32.totalorder 2, %s15
      // Predicated region
      $region49: #{tpu_custom_call.1} parent=5 // pred_check
        %p402 = pneg %p401
      $region50: #{tpu_custom_call.1} parent=5 // pred_check_branch
        %404 = sbr.rel (%p402) target = $region52
      $region51: #{tpu_custom_call.1} parent=5 // pred_region
        %s405 = ssub.s32 %s15, 2
        // Predicated region
        $region53: #{tpu_custom_call.1} parent=51 // pred_check
          %p406 = pneg %p191
        $region54: #{tpu_custom_call.1} parent=51 // pred_check_branch
          %408 = sbr.rel (%p406) target = $region56
        $region55: #{tpu_custom_call.1} parent=51 // pred_region
          %s409 = sand.u32 %s176, 1
          %s410 = scalar_lea.sflag [#allocation3], %s409
          %s411 = sand.u32 %s176, 1
          %s412 = smul.addr %s411, 16
          %s413 = scalar_lea.vmem [#allocation2], %s412
          %415 = dma.done %s410, 256
        $region56: #{tpu_custom_call.1} parent=51 // pred_fallthru
          _
      $region52: #{tpu_custom_call.1} parent=5 // pred_fallthru
        _
    $region6: #{tpu_custom_call.1} parent=1 // loop_footer
      %s19 = sadd.s32 1, %s15
    $region7: #{tpu_custom_call.1} parent=1 // loop_footer_branch
      %14 = sbr.rel target = $region3
    $region8: #{tpu_custom_call.1} parent=1 // loop_exit
      _
    %416 = vsyncpa [#allocation3], 1
    %s417 = scalar_lea.sflag [#allocation3], 1
    %418 = vsyncpa %s417, 1

</llo_original>
